<compile_context>
chip_gen: v5e
topology: v5e:2x2
jax: 0.10.0
libtpu: 0.0.40
codegen_flags: <defaults>
</compile_context>

<pallas_src>
import jax
import jax.numpy as jnp
from jax.experimental import pallas as pl
from jax.experimental.pallas import tpu as pltpu

_SAMPLES_PER_ROW = 128   # samples packed along the lane axis of one row
_MAX_TILE_ROWS = 512     # ~2 MiB of packed f32 x per tile at criteria_nr=8


def _norm_layer_kernel(x_ref, w_ref, thr_ref, o_ref):
    # x_ref:   (TILE_R, 128*N) packed activations                (VMEM)
    # w_ref:   (128*N, 128)    block-diagonal normalized weights (VMEM, resident)
    # thr_ref: (1, 1)          threshold scalar                  (SMEM)
    # o_ref:   (TILE_R, 128)   lane-dense normalized utilities   (VMEM)
    o_ref[...] = (
        jnp.dot(x_ref[...], w_ref[...], preferred_element_type=jnp.float32)
        - thr_ref[0, 0]
    )


def norm_layer_forward(x, weight, bias, threshold):
    """NormLayer forward. x: (B, 1, criteria_nr) -> (B, 1, 1) f32.

    `bias` is accepted for parity with the torch linear head but cancels
    exactly in the (out - zero) / (one - zero) normalization.
    """
    del bias  # cancels exactly: (x@W + b - b) / (sum(W) + b - b)
    f32 = jnp.float32
    B = x.shape[0]
    N = x.shape[-1]
    S = _SAMPLES_PER_ROW

    x2d = x.reshape(B, N).astype(f32)

    # Fold normalization into the weights (exact, no in-kernel divide).
    w = weight.reshape(N).astype(f32)
    w_norm = w / jnp.sum(w)

    # Block-diagonal weight (S*N, S): column s only sees sample s's criteria.
    # Built once here; never re-materialized inside the kernel body.
    w_blk = (jnp.eye(S, dtype=f32)[:, None, :]
             * w_norm[None, :, None]).reshape(S * N, S)

    # Pack 128 samples per row: (B, N) -> (R_total, S*N), zero-padded batch.
    R = -(-B // S)
    R8 = ((R + 7) // 8) * 8                       # sublane-align the row count
    tile_r = min(_MAX_TILE_ROWS, R8)
    R_total = -(-R8 // tile_r) * tile_r
    x_pad = jnp.pad(x2d, ((0, R_total * S - B), (0, 0)))
    x_packed = x_pad.reshape(R_total, S * N)

    thr = threshold.reshape(1, 1).astype(f32)

    out_packed = pl.pallas_call(
        _norm_layer_kernel,
        out_shape=jax.ShapeDtypeStruct((R_total, S), f32),
        grid=(R_total // tile_r,),
        in_specs=[
            pl.BlockSpec((tile_r, S * N), lambda r: (r, 0)),         # packed x
            pl.BlockSpec((S * N, S), lambda r: (0, 0)),              # block-diag W
            pl.BlockSpec((1, 1), lambda r: (0, 0),
                         memory_space=pltpu.SMEM),                   # threshold
        ],
        out_specs=pl.BlockSpec((tile_r, S), lambda r: (r, 0)),
        compiler_params=pltpu.CompilerParams(
            dimension_semantics=("parallel",)),                      # v7x: 2 TCs
    )(x_packed, w_blk, thr)

    # out_packed[r, t] is sample b = r*128 + t.
    return out_packed.reshape(-1)[:B].reshape(B, 1, 1)


def _reference_forward(x, weight, bias, threshold):
    # Pure-JAX reference mirroring the torch module exactly.
    N = x.shape[-1]
    method = lambda t: jnp.einsum("...n,n->...", t, weight)[..., None] + bias
    out = method(x)                                           # (B, 1, 1)
    zero_input = jnp.zeros((1, 1, N), jnp.float32)
    zero = method(zero_input)
    one = method(zero_input + 1.0)
    out = (out - zero) / (one - zero)
    return out - threshold


if __name__ == "__main__":
    key = jax.random.PRNGKey(0)
    k_x, k_w, k_b, k_t = jax.random.split(key, 4)

    batch = 2
    criteria_nr = 8

    # Deterministic synthetic parameters (shapes from the module's __init__).
    weight = jax.random.normal(k_w, (criteria_nr,), jnp.float32) * 0.5
    bias = jax.random.normal(k_b, (1,), jnp.float32) * 0.1
    # ThresholdLayer: uniform(0.1, 0.9) scalar parameter.
    threshold = jax.random.uniform(k_t, (1,), jnp.float32, minval=0.1, maxval=0.9)

    # Input: (batch, 1, criteria_nr), matching torch's (B, 1, -1) convention.
    x = jax.random.uniform(k_x, (batch, 1, criteria_nr), jnp.float32)

    out = norm_layer_forward(x, weight, bias, threshold)
    jax.block_until_ready(out)

    ref = _reference_forward(x, weight, bias, threshold)
    assert out.shape == (batch, 1, 1)
    assert jnp.allclose(out, ref, atol=1e-4, rtol=1e-4), (out, ref)

    # Extra check: a batch that spans several packed 128-sample groups and
    # does not divide 128 (exercises the lane-packing + zero-padding path).
    x_big = jax.random.uniform(jax.random.fold_in(k_x, 1),
                               (1000, 1, criteria_nr), jnp.float32)
    out_big = norm_layer_forward(x_big, weight, bias, threshold)
    jax.block_until_ready(out_big)
    ref_big = _reference_forward(x_big, weight, bias, threshold)
    assert out_big.shape == (1000, 1, 1)
    assert jnp.allclose(out_big, ref_big, atol=1e-4, rtol=1e-4)

    # TODO(synk): for tiny batches (like B=2) the fixed kernel-launch/DMA
    # overhead dominates — in production fuse this op into the surrounding
    # XLA graph or batch many heads/problems into one invocation.
    print("KERNEL_OK")
</pallas_src>

<mosaic_0001>
module attributes {stable_mosaic.version = 11 : i64} {
  func.func @_norm_layer_kernel(%arg0: i32, %arg1: memref<8x1024xf32, #tpu.memory_space<vmem>>, %arg2: memref<1024x128xf32, #tpu.memory_space<vmem>>, %arg3: memref<1x1xf32, #tpu.memory_space<smem>>, %arg4: memref<8x128xf32, #tpu.memory_space<vmem>>) attributes {dimension_semantics = [#tpu.dimension_semantics<parallel>], iteration_bounds = array<i64: 1>, scalar_prefetch = 0 : i64, scratch_operands = 0 : i64, tpu.core_type = #tpu.core_type<tc>, window_params = [{transform_indices = @transform_0, window_bounds = array<i64: 8, 1024>}, {pipeline_mode = #tpu.pipeline_mode<synchronous>, transform_indices = @transform_1, window_bounds = array<i64: 1024, 128>}, {transform_indices = @transform_2, window_bounds = array<i64: 1, 1>}, {transform_indices = @transform_3, window_bounds = array<i64: 8, 128>}]} {
    %c0 = arith.constant 0 : index
    %c0_0 = arith.constant 0 : index
    %0 = vector.load %arg1[%c0, %c0_0] : memref<8x1024xf32, #tpu.memory_space<vmem>>, vector<8x1024xf32>
    %c0_1 = arith.constant 0 : index
    %c0_2 = arith.constant 0 : index
    %1 = vector.load %arg2[%c0_1, %c0_2] : memref<1024x128xf32, #tpu.memory_space<vmem>>, vector<1024x128xf32>
    %cst = arith.constant dense<0.000000e+00> : vector<8x128xf32>
    %2 = tpu.matmul %0, %1, %cst {dimension_numbers = #tpu.dot_dimension_numbers<[1], [0], [0], [1], [0, 0, 1, 1], [], []>} : vector<8x1024xf32>, vector<1024x128xf32>, vector<8x128xf32> -> vector<8x128xf32>
    %c0_3 = arith.constant 0 : index
    %c0_4 = arith.constant 0 : index
    %3 = memref.load %arg3[%c0_3, %c0_4] : memref<1x1xf32, #tpu.memory_space<smem>>
    %4 = vector.broadcast %3 : f32 to vector<8x128xf32>
    %5 = arith.subf %2, %4 : vector<8x128xf32>
    %c0_5 = arith.constant 0 : index
    %c0_6 = arith.constant 0 : index
    %6 = vector.load %arg4[%c0_5, %c0_6] : memref<8x128xf32, #tpu.memory_space<vmem>>, vector<8x128xf32>
    tpu.vector_store %arg4[%c0_5, %c0_6], %5 {strides = array<i32>} : memref<8x128xf32, #tpu.memory_space<vmem>>, vector<8x128xf32>,
    return
  }
  func.func @transform_0(%arg0: i32) -> (i32, i32) {
    %c0_i32 = arith.constant 0 : i32
    %c0_i32_0 = arith.constant 0 : i32
    return %arg0, %c0_i32 : i32, i32
  }
  func.func @transform_1(%arg0: i32) -> (i32, i32) {
    %c0_i32 = arith.constant 0 : i32
    %c0_i32_0 = arith.constant 0 : i32
    %c0_i32_1 = arith.constant 0 : i32
    return %c0_i32, %c0_i32_0 : i32, i32
  }
  func.func @transform_2(%arg0: i32) -> (i32, i32) {
    %c0_i32 = arith.constant 0 : i32
    %c0_i32_0 = arith.constant 0 : i32
    %c0_i32_1 = arith.constant 0 : i32
    return %c0_i32, %c0_i32_0 : i32, i32
  }
  func.func @transform_3(%arg0: i32) -> (i32, i32) {
    %c0_i32 = arith.constant 0 : i32
    %c0_i32_0 = arith.constant 0 : i32
    return %arg0, %c0_i32 : i32, i32
  }
}

</mosaic_0001>

<llo_original>
// kernel: tpu_custom_call.1
$region0: #{tpu_custom_call.1}
  #allocation0 [shape = 'u32[]', space=smem, size = 0x4, offset = 0x4, fixed_abs, tag = 'smem constant byte address 0x4 - core index']
  #allocation1 [shape = 'u32[72,128]{1,0:T(1,128)}', space=vmem, size = 0x9000, scoped, tag = 'internal scratch']
  #allocation2 [shape = 'f32[1,1]{1,0:T(1,128)S(6)}', space=smem, size = 0x200, scoped, tag = 'scoped memory for tpu_custom_call.1']
  %s0 = inlined_call_operand.hbm [shape: f32[8,1024], index: 0, kind: input, shape index: {}]
  %s1 = inlined_call_operand.hbm [shape: f32[1024,128], index: 1, kind: input, shape index: {}]
  %s2 = inlined_call_operand.<no memory space> [shape: f32[1,1], index: 2, kind: input, shape index: {}]
  %s3 = inlined_call_operand.hbm [shape: f32[8,128], index: 3, kind: output, shape index: {}]
  %s4 = sld [smem:[#allocation0]]
  $region30: #{tpu_custom_call.1} parent=0
    _
  %s6 = ssub.s32 1, %s4
  %s7 = scalar_select 0, %s6, %s4
  %8 = sst [smem:[#allocation2]] %s2
  $region1: #{tpu_custom_call.1} parent=0
    #allocation3 [shape = 'u8[32768]{0}', space=vmem, size = 0x8000, scoped, tag = 'input window, operand 0, single buffered']
    #allocation4 [shape = 's32[1]{0}', space=sflag, size = 0x4, scoped, tag = 'scoped memory for tpu_custom_call.1']
    #allocation5 [shape = 's32[1]{0}', space=sflag, size = 0x4, scoped, tag = 'scoped memory for tpu_custom_call.1']
    #allocation6 [shape = 'u8[524288]{0}', space=vmem, size = 0x80000, scoped, tag = 'input window, operand 1, single buffered']
    #allocation7 [shape = 's32[1]{0}', space=sflag, size = 0x4, scoped, tag = 'scoped memory for tpu_custom_call.1']
    #allocation8 [shape = 'u8[4096]{0}', space=vmem, size = 0x1000, scoped, tag = 'output window, operand 0, single buffered']
    %9 = vsyncpa [#allocation4], 0
    %10 = vsyncpa [#allocation7], 0
    %11 = vsyncpa [#allocation5], 0
    // Predicated region
    $region2: #{tpu_custom_call.1} parent=1 // pred_check
      _
    $region3: #{tpu_custom_call.1} parent=1 // pred_check_branch
      %13 = sbr.rel (0) target = $region5
    $region4: #{tpu_custom_call.1} parent=1 // pred_region
      %15 = vsyncadd [#allocation4], 0
      %s17 = sshll.u32 %s0, 4
      %s18 = int_to_ptr.hbm [resolvable:$true] %s17
      %s19 = sshll.u32 [#allocation3], 4
      %s20 = int_to_ptr.vmem [resolvable:$true] %s19
      %22 = dma.hbm_to_vmem [thread:$0]  %s18, 1024, %s20, [#allocation4]
    $region5: #{tpu_custom_call.1} parent=1 // pred_fallthru
      _
    // Predicated region
    $region6: #{tpu_custom_call.1} parent=1 // pred_check
      _
    $region7: #{tpu_custom_call.1} parent=1 // pred_check_branch
      %24 = sbr.rel (0) target = $region9
    $region8: #{tpu_custom_call.1} parent=1 // pred_region
      %26 = vsyncadd [#allocation7], 0
      %s27 = sshll.u32 %s1, 4
      %s28 = int_to_ptr.hbm [resolvable:$true] %s27
      %s29 = sshll.u32 [#allocation6], 4
      %s30 = int_to_ptr.vmem [resolvable:$true] %s29
      %35 = dma.hbm_to_vmem [thread:$0]  %s28, 16384, %s30, [#allocation7], 128, 128, 8
    $region9: #{tpu_custom_call.1} parent=1 // pred_fallthru
      _
    // Predicated region
    $region10: #{tpu_custom_call.1} parent=1 // pred_check
      _
    $region11: #{tpu_custom_call.1} parent=1 // pred_check_branch
      %37 = sbr.rel (0) target = $region13
    $region12: #{tpu_custom_call.1} parent=1 // pred_region
      _
    $region13: #{tpu_custom_call.1} parent=1 // pred_fallthru
      _
    // Predicated region
    $region14: #{tpu_custom_call.1} parent=1 // pred_check
      _
    $region15: #{tpu_custom_call.1} parent=1 // pred_check_branch
      %39 = sbr.rel (0) target = $region17
    $region16: #{tpu_custom_call.1} parent=1 // pred_region
      %41 = dma.done [#allocation4], 1024
    $region17: #{tpu_custom_call.1} parent=1 // pred_fallthru
      _
    // Predicated region
    $region18: #{tpu_custom_call.1} parent=1 // pred_check
      _
    $region19: #{tpu_custom_call.1} parent=1 // pred_check_branch
      %43 = sbr.rel (0) target = $region21
    $region20: #{tpu_custom_call.1} parent=1 // pred_region
      %45 = dma.done [#allocation7], 16384
    $region21: #{tpu_custom_call.1} parent=1 // pred_fallthru
      _
    %v46 = vld [vmem:[#allocation3] sm:$0xff]
    %v47 = vld [vmem:[#allocation3 + $0x8] sm:$0xff]
    %v48 = vld [vmem:[#allocation3 + $0x10] sm:$0xff]
    %v49 = vld [vmem:[#allocation3 + $0x18] sm:$0xff]
    %v50 = vld [vmem:[#allocation3 + $0x20] sm:$0xff]
    %v51 = vld [vmem:[#allocation3 + $0x28] sm:$0xff]
    %v52 = vld [vmem:[#allocation3 + $0x30] sm:$0xff]
    %v53 = vld [vmem:[#allocation3 + $0x38] sm:$0xff]
    %v54 = vld [vmem:[#allocation6] sm:$0xff]
    %v55 = vld [vmem:[#allocation6 + $0x8] sm:$0xff]
    %v56 = vld [vmem:[#allocation6 + $0x10] sm:$0xff]
    %v57 = vld [vmem:[#allocation6 + $0x18] sm:$0xff]
    %v58 = vld [vmem:[#allocation6 + $0x20] sm:$0xff]
    %v59 = vld [vmem:[#allocation6 + $0x28] sm:$0xff]
    %v60 = vld [vmem:[#allocation6 + $0x30] sm:$0xff]
    %v61 = vld [vmem:[#allocation6 + $0x38] sm:$0xff]
    %v62 = vld [vmem:[#allocation6 + $0x40] sm:$0xff]
    %v63 = vld [vmem:[#allocation6 + $0x48] sm:$0xff]
    %v64 = vld [vmem:[#allocation6 + $0x50] sm:$0xff]
    %v65 = vld [vmem:[#allocation6 + $0x58] sm:$0xff]
    %v66 = vld [vmem:[#allocation6 + $0x60] sm:$0xff]
    %v67 = vld [vmem:[#allocation6 + $0x68] sm:$0xff]
    %v68 = vld [vmem:[#allocation6 + $0x70] sm:$0xff]
    %v69 = vld [vmem:[#allocation6 + $0x78] sm:$0xff]
    %v70 = vld [vmem:[#allocation6 + $0x80] sm:$0xff]
    %v71 = vld [vmem:[#allocation6 + $0x88] sm:$0xff]
    %v72 = vld [vmem:[#allocation6 + $0x90] sm:$0xff]
    %v73 = vld [vmem:[#allocation6 + $0x98] sm:$0xff]
    %v74 = vld [vmem:[#allocation6 + $0xa0] sm:$0xff]
    %v75 = vld [vmem:[#allocation6 + $0xa8] sm:$0xff]
    %v76 = vld [vmem:[#allocation6 + $0xb0] sm:$0xff]
    %v77 = vld [vmem:[#allocation6 + $0xb8] sm:$0xff]
    %v78 = vld [vmem:[#allocation6 + $0xc0] sm:$0xff]
    %v79 = vld [vmem:[#allocation6 + $0xc8] sm:$0xff]
    %v80 = vld [vmem:[#allocation6 + $0xd0] sm:$0xff]
    %v81 = vld [vmem:[#allocation6 + $0xd8] sm:$0xff]
    %v82 = vld [vmem:[#allocation6 + $0xe0] sm:$0xff]
    %v83 = vld [vmem:[#allocation6 + $0xe8] sm:$0xff]
    %v84 = vld [vmem:[#allocation6 + $0xf0] sm:$0xff]
    %v85 = vld [vmem:[#allocation6 + $0xf8] sm:$0xff]
    %v86 = vld [vmem:[#allocation6 + $0x100] sm:$0xff]
    %v87 = vld [vmem:[#allocation6 + $0x108] sm:$0xff]
    %v88 = vld [vmem:[#allocation6 + $0x110] sm:$0xff]
    %v89 = vld [vmem:[#allocation6 + $0x118] sm:$0xff]
    %v90 = vld [vmem:[#allocation6 + $0x120] sm:$0xff]
    %v91 = vld [vmem:[#allocation6 + $0x128] sm:$0xff]
    %v92 = vld [vmem:[#allocation6 + $0x130] sm:$0xff]
    %v93 = vld [vmem:[#allocation6 + $0x138] sm:$0xff]
    %v94 = vld [vmem:[#allocation6 + $0x140] sm:$0xff]
    %v95 = vld [vmem:[#allocation6 + $0x148] sm:$0xff]
    %v96 = vld [vmem:[#allocation6 + $0x150] sm:$0xff]
    %v97 = vld [vmem:[#allocation6 + $0x158] sm:$0xff]
    %v98 = vld [vmem:[#allocation6 + $0x160] sm:$0xff]
    %v99 = vld [vmem:[#allocation6 + $0x168] sm:$0xff]
    %v100 = vld [vmem:[#allocation6 + $0x170] sm:$0xff]
    %v101 = vld [vmem:[#allocation6 + $0x178] sm:$0xff]
    %v102 = vld [vmem:[#allocation6 + $0x180] sm:$0xff]
    %v103 = vld [vmem:[#allocation6 + $0x188] sm:$0xff]
    %v104 = vld [vmem:[#allocation6 + $0x190] sm:$0xff]
    %v105 = vld [vmem:[#allocation6 + $0x198] sm:$0xff]
    %v106 = vld [vmem:[#allocation6 + $0x1a0] sm:$0xff]
    %v107 = vld [vmem:[#allocation6 + $0x1a8] sm:$0xff]
    %v108 = vld [vmem:[#allocation6 + $0x1b0] sm:$0xff]
    %v109 = vld [vmem:[#allocation6 + $0x1b8] sm:$0xff]
    %v110 = vld [vmem:[#allocation6 + $0x1c0] sm:$0xff]
    %v111 = vld [vmem:[#allocation6 + $0x1c8] sm:$0xff]
    %v112 = vld [vmem:[#allocation6 + $0x1d0] sm:$0xff]
    %v113 = vld [vmem:[#allocation6 + $0x1d8] sm:$0xff]
    %v114 = vld [vmem:[#allocation6 + $0x1e0] sm:$0xff]
    %v115 = vld [vmem:[#allocation6 + $0x1e8] sm:$0xff]
    %v116 = vld [vmem:[#allocation6 + $0x1f0] sm:$0xff]
    %v117 = vld [vmem:[#allocation6 + $0x1f8] sm:$0xff]
    %v118 = vld [vmem:[#allocation6 + $0x200] sm:$0xff]
    %v119 = vld [vmem:[#allocation6 + $0x208] sm:$0xff]
    %v120 = vld [vmem:[#allocation6 + $0x210] sm:$0xff]
    %v121 = vld [vmem:[#allocation6 + $0x218] sm:$0xff]
    %v122 = vld [vmem:[#allocation6 + $0x220] sm:$0xff]
    %v123 = vld [vmem:[#allocation6 + $0x228] sm:$0xff]
    %v124 = vld [vmem:[#allocation6 + $0x230] sm:$0xff]
    %v125 = vld [vmem:[#allocation6 + $0x238] sm:$0xff]
    %v126 = vld [vmem:[#allocation6 + $0x240] sm:$0xff]
    %v127 = vld [vmem:[#allocation6 + $0x248] sm:$0xff]
    %v128 = vld [vmem:[#allocation6 + $0x250] sm:$0xff]
    %v129 = vld [vmem:[#allocation6 + $0x258] sm:$0xff]
    %v130 = vld [vmem:[#allocation6 + $0x260] sm:$0xff]
    %v131 = vld [vmem:[#allocation6 + $0x268] sm:$0xff]
    %v132 = vld [vmem:[#allocation6 + $0x270] sm:$0xff]
    %v133 = vld [vmem:[#allocation6 + $0x278] sm:$0xff]
    %v134 = vld [vmem:[#allocation6 + $0x280] sm:$0xff]
    %v135 = vld [vmem:[#allocation6 + $0x288] sm:$0xff]
    %v136 = vld [vmem:[#allocation6 + $0x290] sm:$0xff]
    %v137 = vld [vmem:[#allocation6 + $0x298] sm:$0xff]
    %v138 = vld [vmem:[#allocation6 + $0x2a0] sm:$0xff]
    %v139 = vld [vmem:[#allocation6 + $0x2a8] sm:$0xff]
    %v140 = vld [vmem:[#allocation6 + $0x2b0] sm:$0xff]
    %v141 = vld [vmem:[#allocation6 + $0x2b8] sm:$0xff]
    %v142 = vld [vmem:[#allocation6 + $0x2c0] sm:$0xff]
    %v143 = vld [vmem:[#allocation6 + $0x2c8] sm:$0xff]
    %v144 = vld [vmem:[#allocation6 + $0x2d0] sm:$0xff]
    %v145 = vld [vmem:[#allocation6 + $0x2d8] sm:$0xff]
    %v146 = vld [vmem:[#allocation6 + $0x2e0] sm:$0xff]
    %v147 = vld [vmem:[#allocation6 + $0x2e8] sm:$0xff]
    %v148 = vld [vmem:[#allocation6 + $0x2f0] sm:$0xff]
    %v149 = vld [vmem:[#allocation6 + $0x2f8] sm:$0xff]
    %v150 = vld [vmem:[#allocation6 + $0x300] sm:$0xff]
    %v151 = vld [vmem:[#allocation6 + $0x308] sm:$0xff]
    %v152 = vld [vmem:[#allocation6 + $0x310] sm:$0xff]
    %v153 = vld [vmem:[#allocation6 + $0x318] sm:$0xff]
    %v154 = vld [vmem:[#allocation6 + $0x320] sm:$0xff]
    %v155 = vld [vmem:[#allocation6 + $0x328] sm:$0xff]
    %v156 = vld [vmem:[#allocation6 + $0x330] sm:$0xff]
    %v157 = vld [vmem:[#allocation6 + $0x338] sm:$0xff]
    %v158 = vld [vmem:[#allocation6 + $0x340] sm:$0xff]
    %v159 = vld [vmem:[#allocation6 + $0x348] sm:$0xff]
    %v160 = vld [vmem:[#allocation6 + $0x350] sm:$0xff]
    %v161 = vld [vmem:[#allocation6 + $0x358] sm:$0xff]
    %v162 = vld [vmem:[#allocation6 + $0x360] sm:$0xff]
    %v163 = vld [vmem:[#allocation6 + $0x368] sm:$0xff]
    %v164 = vld [vmem:[#allocation6 + $0x370] sm:$0xff]
    %v165 = vld [vmem:[#allocation6 + $0x378] sm:$0xff]
    %v166 = vld [vmem:[#allocation6 + $0x380] sm:$0xff]
    %v167 = vld [vmem:[#allocation6 + $0x388] sm:$0xff]
    %v168 = vld [vmem:[#allocation6 + $0x390] sm:$0xff]
    %v169 = vld [vmem:[#allocation6 + $0x398] sm:$0xff]
    %v170 = vld [vmem:[#allocation6 + $0x3a0] sm:$0xff]
    %v171 = vld [vmem:[#allocation6 + $0x3a8] sm:$0xff]
    %v172 = vld [vmem:[#allocation6 + $0x3b0] sm:$0xff]
    %v173 = vld [vmem:[#allocation6 + $0x3b8] sm:$0xff]
    %v174 = vld [vmem:[#allocation6 + $0x3c0] sm:$0xff]
    %v175 = vld [vmem:[#allocation6 + $0x3c8] sm:$0xff]
    %v176 = vld [vmem:[#allocation6 + $0x3d0] sm:$0xff]
    %v177 = vld [vmem:[#allocation6 + $0x3d8] sm:$0xff]
    %v178 = vld [vmem:[#allocation6 + $0x3e0] sm:$0xff]
    %v179 = vld [vmem:[#allocation6 + $0x3e8] sm:$0xff]
    %v180 = vld [vmem:[#allocation6 + $0x3f0] sm:$0xff]
    %v181 = vld [vmem:[#allocation6 + $0x3f8] sm:$0xff]
    %182 = vmatpush.msra.mxu0 %v69
    %183 = vmatpush.msra.mxu0 %v68
    %184 = vmatpush.msra.mxu0 %v67
    %185 = vmatpush.msra.mxu0 %v66
    %186 = vmatpush.msra.mxu0 %v65
    %187 = vmatpush.msra.mxu0 %v64
    %188 = vmatpush.msra.mxu0 %v63
    %189 = vmatpush.msra.mxu0 %v62
    %190 = vmatpush.msra.mxu0 %v61
    %191 = vmatpush.msra.mxu0 %v60
    %192 = vmatpush.msra.mxu0 %v59
    %193 = vmatpush.msra.mxu0 %v58
    %194 = vmatpush.msra.mxu0 %v57
    %195 = vmatpush.msra.mxu0 %v56
    %196 = vmatpush.msra.mxu0 %v55
    %197 = vmatpush.msra.mxu0 %v54
    %198 = vmatmul.f32.gmra.mxu0 %v46
    %v199 = vpop.f32.mrf.mxu0
    %v200 = vadd.f32 0.0, %v199
    %201 = vdwg.mxu0
    %202 = vmatpush.msra.mxu0 %v85
    %203 = vmatpush.msra.mxu0 %v84
    %204 = vmatpush.msra.mxu0 %v83
    %205 = vmatpush.msra.mxu0 %v82
    %206 = vmatpush.msra.mxu0 %v81
    %207 = vmatpush.msra.mxu0 %v80
    %208 = vmatpush.msra.mxu0 %v79
    %209 = vmatpush.msra.mxu0 %v78
    %210 = vmatpush.msra.mxu0 %v77
    %211 = vmatpush.msra.mxu0 %v76
    %212 = vmatpush.msra.mxu0 %v75
    %213 = vmatpush.msra.mxu0 %v74
    %214 = vmatpush.msra.mxu0 %v73
    %215 = vmatpush.msra.mxu0 %v72
    %216 = vmatpush.msra.mxu0 %v71
    %217 = vmatpush.msra.mxu0 %v70
    %218 = vmatmul.f32.gmra.mxu0 %v47
    %v219 = vpop.f32.mrf.mxu0
    %v220 = vadd.f32 %v200, %v219
    %221 = vdwg.mxu0
    %222 = vmatpush.msra.mxu0 %v101
    %223 = vmatpush.msra.mxu0 %v100
    %224 = vmatpush.msra.mxu0 %v99
    %225 = vmatpush.msra.mxu0 %v98
    %226 = vmatpush.msra.mxu0 %v97
    %227 = vmatpush.msra.mxu0 %v96
    %228 = vmatpush.msra.mxu0 %v95
    %229 = vmatpush.msra.mxu0 %v94
    %230 = vmatpush.msra.mxu0 %v93
    %231 = vmatpush.msra.mxu0 %v92
    %232 = vmatpush.msra.mxu0 %v91
    %233 = vmatpush.msra.mxu0 %v90
    %234 = vmatpush.msra.mxu0 %v89
    %235 = vmatpush.msra.mxu0 %v88
    %236 = vmatpush.msra.mxu0 %v87
    %237 = vmatpush.msra.mxu0 %v86
    %238 = vmatmul.f32.gmra.mxu0 %v48
    %v239 = vpop.f32.mrf.mxu0
    %v240 = vadd.f32 %v220, %v239
    %241 = vdwg.mxu0
    %242 = vmatpush.msra.mxu0 %v117
    %243 = vmatpush.msra.mxu0 %v116
    %244 = vmatpush.msra.mxu0 %v115
    %245 = vmatpush.msra.mxu0 %v114
    %246 = vmatpush.msra.mxu0 %v113
    %247 = vmatpush.msra.mxu0 %v112
    %248 = vmatpush.msra.mxu0 %v111
    %249 = vmatpush.msra.mxu0 %v110
    %250 = vmatpush.msra.mxu0 %v109
    %251 = vmatpush.msra.mxu0 %v108
    %252 = vmatpush.msra.mxu0 %v107
    %253 = vmatpush.msra.mxu0 %v106
    %254 = vmatpush.msra.mxu0 %v105
    %255 = vmatpush.msra.mxu0 %v104
    %256 = vmatpush.msra.mxu0 %v103
    %257 = vmatpush.msra.mxu0 %v102
    %258 = vmatmul.f32.gmra.mxu0 %v49
    %v259 = vpop.f32.mrf.mxu0
    %v260 = vadd.f32 %v240, %v259
    %261 = vdwg.mxu0
    %262 = vmatpush.msra.mxu0 %v133
    %263 = vmatpush.msra.mxu0 %v132
    %264 = vmatpush.msra.mxu0 %v131
    %265 = vmatpush.msra.mxu0 %v130
    %266 = vmatpush.msra.mxu0 %v129
    %267 = vmatpush.msra.mxu0 %v128
    %268 = vmatpush.msra.mxu0 %v127
    %269 = vmatpush.msra.mxu0 %v126
    %270 = vmatpush.msra.mxu0 %v125
    %271 = vmatpush.msra.mxu0 %v124
    %272 = vmatpush.msra.mxu0 %v123
    %273 = vmatpush.msra.mxu0 %v122
    %274 = vmatpush.msra.mxu0 %v121
    %275 = vmatpush.msra.mxu0 %v120
    %276 = vmatpush.msra.mxu0 %v119
    %277 = vmatpush.msra.mxu0 %v118
    %278 = vmatmul.f32.gmra.mxu0 %v50
    %v279 = vpop.f32.mrf.mxu0
    %v280 = vadd.f32 %v260, %v279
    %281 = vdwg.mxu0
    %282 = vmatpush.msra.mxu0 %v149
    %283 = vmatpush.msra.mxu0 %v148
    %284 = vmatpush.msra.mxu0 %v147
    %285 = vmatpush.msra.mxu0 %v146
    %286 = vmatpush.msra.mxu0 %v145
    %287 = vmatpush.msra.mxu0 %v144
    %288 = vmatpush.msra.mxu0 %v143
    %289 = vmatpush.msra.mxu0 %v142
    %290 = vmatpush.msra.mxu0 %v141
    %291 = vmatpush.msra.mxu0 %v140
    %292 = vmatpush.msra.mxu0 %v139
    %293 = vmatpush.msra.mxu0 %v138
    %294 = vmatpush.msra.mxu0 %v137
    %295 = vmatpush.msra.mxu0 %v136
    %296 = vmatpush.msra.mxu0 %v135
    %297 = vmatpush.msra.mxu0 %v134
    %298 = vmatmul.f32.gmra.mxu0 %v51
    %v299 = vpop.f32.mrf.mxu0
    %v300 = vadd.f32 %v280, %v299
    %301 = vdwg.mxu0
    %302 = vmatpush.msra.mxu0 %v165
    %303 = vmatpush.msra.mxu0 %v164
    %304 = vmatpush.msra.mxu0 %v163
    %305 = vmatpush.msra.mxu0 %v162
    %306 = vmatpush.msra.mxu0 %v161
    %307 = vmatpush.msra.mxu0 %v160
    %308 = vmatpush.msra.mxu0 %v159
    %309 = vmatpush.msra.mxu0 %v158
    %310 = vmatpush.msra.mxu0 %v157
    %311 = vmatpush.msra.mxu0 %v156
    %312 = vmatpush.msra.mxu0 %v155
    %313 = vmatpush.msra.mxu0 %v154
    %314 = vmatpush.msra.mxu0 %v153
    %315 = vmatpush.msra.mxu0 %v152
    %316 = vmatpush.msra.mxu0 %v151
    %317 = vmatpush.msra.mxu0 %v150
    %318 = vmatmul.f32.gmra.mxu0 %v52
    %v319 = vpop.f32.mrf.mxu0
    %v320 = vadd.f32 %v300, %v319
    %321 = vdwg.mxu0
    %322 = vmatpush.msra.mxu0 %v181
    %323 = vmatpush.msra.mxu0 %v180
    %324 = vmatpush.msra.mxu0 %v179
    %325 = vmatpush.msra.mxu0 %v178
    %326 = vmatpush.msra.mxu0 %v177
    %327 = vmatpush.msra.mxu0 %v176
    %328 = vmatpush.msra.mxu0 %v175
    %329 = vmatpush.msra.mxu0 %v174
    %330 = vmatpush.msra.mxu0 %v173
    %331 = vmatpush.msra.mxu0 %v172
    %332 = vmatpush.msra.mxu0 %v171
    %333 = vmatpush.msra.mxu0 %v170
    %334 = vmatpush.msra.mxu0 %v169
    %335 = vmatpush.msra.mxu0 %v168
    %336 = vmatpush.msra.mxu0 %v167
    %337 = vmatpush.msra.mxu0 %v166
    %338 = vmatmul.f32.gmra.mxu0 %v53
    %v339 = vpop.f32.mrf.mxu0
    %v340 = vadd.f32 %v320, %v339
    %341 = vdwg.mxu0
    %s342 = sld [smem:[#allocation2]]
    %v343 = vstv %s342
    %v344 = vsub.f32 %v340, %v343
    %345 = vst [vmem:[#allocation8] sm:$0xff] %v344
    // Predicated region
    $region22: #{tpu_custom_call.1} parent=1 // pred_check
      _
    $region23: #{tpu_custom_call.1} parent=1 // pred_check_branch
      %347 = sbr.rel (0) target = $region25
    $region24: #{tpu_custom_call.1} parent=1 // pred_region
      %349 = vsyncadd [#allocation5], 0
      %s351 = sshll.u32 [#allocation8], 4
      %s352 = int_to_ptr.vmem [resolvable:$true] %s351
      %s353 = sshll.u32 %s3, 4
      %s354 = int_to_ptr.hbm [resolvable:$true] %s353
      %356 = dma.vmem_to_hbm [thread:$0]  %s352, 128, %s354, [#allocation5]
    $region25: #{tpu_custom_call.1} parent=1 // pred_fallthru
      _
    // Predicated region
    $region26: #{tpu_custom_call.1} parent=1 // pred_check
      _
    $region27: #{tpu_custom_call.1} parent=1 // pred_check_branch
      %358 = sbr.rel (0) target = $region29
    $region28: #{tpu_custom_call.1} parent=1 // pred_region
      %360 = dma.done [#allocation5], 128
    $region29: #{tpu_custom_call.1} parent=1 // pred_fallthru
      _
    %361 = vsyncpa [#allocation4], 1
    %362 = vsyncpa [#allocation7], 1
    %363 = vsyncpa [#allocation5], 1

</llo_original>
